<compile_context>
chip_gen: v7x
topology: tpu7x:2x2x1
jax: 0.10.0
libtpu: 0.0.40
codegen_flags: <defaults>
</compile_context>

<pallas_src>
import math

import jax
import jax.numpy as jnp
from jax.experimental import pallas as pl
from jax.experimental.pallas import tpu as pltpu

BN_EPS = 1e-5
LANE = 128      # channel padding target (lane width)
SUBLANE = 8     # time padding target (sublane width)


def _round_up(x, m):
    return (x + m - 1) // m * m


def _pick_batch_tile(batch, seq_len, target_rows=2048):
    """Largest divisor of `batch` whose tile has <= target_rows time rows,
    while keeping >= 2 grid steps when possible (v7x: 2 TensorCores/chip)."""
    best = 1
    for tb in range(1, batch + 1):
        if batch % tb == 0 and tb * seq_len <= target_rows:
            best = tb
    if batch >= 2 and batch // best < 2:
        for tb in range(best, 0, -1):
            if batch % tb == 0 and batch // tb >= 2:
                best = tb
                break
    return best


def _vmem_limit_bytes():
    """Generation-aware VMEM limit: ~3/4 of physical, capped at 96 MiB."""
    try:
        cap = int(pltpu.get_tpu_info().vmem_capacity_bytes)
    except Exception:
        cap = 64 * 1024 * 1024          # safe on every generation
    return max(32 * 1024 * 1024, min(3 * cap // 4, 96 * 1024 * 1024))


def _make_tcn_kernel(layer_meta, tb, lp, cp, n_ds):
    """Build the fused all-layers kernel.  `layer_meta` is static metadata."""
    m = tb * lp

    def kernel(*refs):
        x_ref, w1_ref, w2_ref = refs[0], refs[1], refs[2]
        if n_ds > 0:
            wd_ref, bias_ref = refs[3], refs[4]
        else:
            wd_ref, bias_ref = None, refs[3]
        out_ref = refs[-1]

        h = x_ref[...].reshape(m, cp).astype(jnp.float32)     # (TB*Lp, CP)

        # Row position inside its own sequence, without integer modulo.
        t_in_seq = jax.lax.broadcasted_iota(
            jnp.int32, (tb, lp, cp), 1).reshape(m, cp)

        mask_cache = {}

        def causal_mask(off):
            if off not in mask_cache:
                mask_cache[off] = t_in_seq >= off
            return mask_cache[off]

        def dilated_causal_conv(z_b, w, b, dilation, n_active):
            """Project-first causal dilated conv.

            One (M,CP) x (CP, n_active*CP) bf16 matmul; the per-tap lane
            slices of the f32 result are then rolled along time by their tap
            offset (XLU) and masked at sequence starts.  Roll commutes with
            the row-wise matmul, so this equals convolving the causally
            shifted activation (Conv1d(padding=(K-1)*d) + Chomp1d).
            """
            p = jnp.dot(z_b, w, preferred_element_type=jnp.float32)
            acc = p[:, 0:cp]                       # offset-0 tap: no shift/mask
            for j in range(1, n_active):
                off = j * dilation
                rolled = pltpu.roll(p[:, j * cp:(j + 1) * cp], shift=off, axis=0)
                acc = acc + jnp.where(causal_mask(off), rolled, 0.0)
            return acc + b

        for li, meta in enumerate(layer_meta):
            d = meta["dilation"]
            na = meta["n_active"]
            ncols = na * cp
            h_b = h.astype(jnp.bfloat16)           # bf16 MXU operand

            # conv1 (BN1 folded into w1) + relu   (dropout = identity in eval)
            y = dilated_causal_conv(h_b, w1_ref[li, :, :ncols],
                                    bias_ref[meta["b1_idx"]], d, na)
            y = jnp.maximum(y, 0.0)

            # conv2 (BN2 folded into w2) + relu
            y2 = dilated_causal_conv(y.astype(jnp.bfloat16),
                                     w2_ref[li, :, :ncols],
                                     bias_ref[meta["b2_idx"]], d, na)
            y2 = jnp.maximum(y2, 0.0)

            # residual branch: identity skipped at trace time when Cin == Cout
            if meta["has_downsample"]:
                res = jnp.dot(h_b, wd_ref[meta["ds_idx"]],
                              preferred_element_type=jnp.float32)
                res = res + bias_ref[meta["bd_idx"]]
            else:
                res = h

            h = jnp.maximum(y2 + res, 0.0)

        out_ref[...] = h.astype(out_ref.dtype).reshape(tb, lp, cp)

    return kernel


def init_tcn_params(key, num_inputs, num_channels, kernel_size=2):
    """Deterministic synthetic parameters mirroring the PyTorch module."""
    params = []
    in_c = num_inputs
    bn_scale = 1.0 / math.sqrt(1.0 + BN_EPS)   # eval-mode BN with fresh stats
    for out_c in num_channels:
        key, k1, k2, k3 = jax.random.split(key, 4)
        w1 = jax.random.normal(k1, (kernel_size, in_c, out_c), jnp.float32) * \
            math.sqrt(2.0 / (in_c * kernel_size))
        w2 = jax.random.normal(k2, (kernel_size, out_c, out_c), jnp.float32) * \
            math.sqrt(2.0 / (out_c * kernel_size))
        layer = dict(
            w1=w1, b1=jnp.zeros((out_c,), jnp.float32),
            w2=w2, b2=jnp.zeros((out_c,), jnp.float32),
            bn1_scale=jnp.full((in_c,), bn_scale, jnp.float32),
            bn2_scale=jnp.full((out_c,), bn_scale, jnp.float32),
        )
        if in_c != out_c:
            layer["wd"] = jax.random.normal(k3, (in_c, out_c), jnp.float32) * \
                math.sqrt(2.0 / in_c)
            layer["bd"] = jnp.zeros((out_c,), jnp.float32)
        params.append(layer)
        in_c = out_c
    return params


def _prepare_layer_args(params, cp, L):
    """Fold BN into the convs, pack project-first (CP, K*CP) bf16 weights with
    dead taps dropped, and stack weights / biases into a few flat arrays."""
    w1_stack, w2_stack, wd_stack, bias_rows = [], [], [], []
    meta = []
    for i, p in enumerate(params):
        ks, cin, cout = p["w1"].shape
        d = 2 ** i
        # Active tap j contributes h[t - j*d]; taps with j*d >= L never touch a
        # real (non-padding) row and are dropped at pack time.
        n_active = sum(1 for j in range(ks) if j * d < L)

        # BN precedes each conv in the module; fold its eval-mode scale
        # (running mean 0, var 1, gamma 1, beta 0) into the conv input channels.
        w1f = p["w1"] * p["bn1_scale"][None, :, None]          # (ks, cin, cout)
        w2f = p["w2"] * p["bn2_scale"][None, :, None]          # (ks, cout, cout)

        def pack_wide(w, c_in, c_out):
            # Column block j holds the tap with offset j*d, i.e. conv tap
            # index k = ks-1-j (PyTorch: y[t] = sum_k w[k] @ x[t-(ks-1-k)*d]).
            wide = jnp.zeros((cp, ks * cp), jnp.float32)
            for j in range(ks):
                k = ks - 1 - j
                wide = wide.at[:c_in, j * cp:j * cp + c_out].set(w[k])
            return wide

        w1_stack.append(pack_wide(w1f, cin, cout))
        w2_stack.append(pack_wide(w2f, cout, cout))

        b1_idx = len(bias_rows)
        bias_rows.append(jnp.zeros((1, cp), jnp.float32).at[0, :cout].set(p["b1"]))
        b2_idx = len(bias_rows)
        bias_rows.append(jnp.zeros((1, cp), jnp.float32).at[0, :cout].set(p["b2"]))

        has_ds = "wd" in p
        ds_idx = bd_idx = None
        if has_ds:
            ds_idx = len(wd_stack)
            wd_stack.append(jnp.zeros((cp, cp), jnp.float32)
                            .at[:cin, :cout].set(p["wd"]))
            bd_idx = len(bias_rows)
            bias_rows.append(jnp.zeros((1, cp), jnp.float32)
                             .at[0, :cout].set(p["bd"]))

        meta.append(dict(dilation=d, kernel_size=ks, n_active=n_active,
                         has_downsample=has_ds, ds_idx=ds_idx,
                         b1_idx=b1_idx, b2_idx=b2_idx, bd_idx=bd_idx))

    args = [jnp.stack(w1_stack).astype(jnp.bfloat16),      # (nl, CP, K*CP)
            jnp.stack(w2_stack).astype(jnp.bfloat16)]      # (nl, CP, K*CP)
    n_ds = len(wd_stack)
    if n_ds > 0:
        args.append(jnp.stack(wd_stack).astype(jnp.bfloat16))   # (nd, CP, CP)
    args.append(jnp.stack(bias_rows))                      # (nb, 1, CP) f32
    return args, meta, n_ds


def temporal_conv_net(x_ncl, params):
    """x_ncl: (B, C, L) (PyTorch layout) -> (B, C_last, L)."""
    B, c0, L = x_ncl.shape
    c_last = params[-1]["w1"].shape[2]
    max_c = max([c0] + [p["w1"].shape[2] for p in params])
    cp = _round_up(max_c, LANE)
    lp = _round_up(L, SUBLANE)
    tb = _pick_batch_tile(B, lp)

    flat_args, meta, n_ds = _prepare_layer_args(params, cp, L)
    kernel = _make_tcn_kernel(meta, tb, lp, cp, n_ds)

    # NCL -> (B, Lp, Cp) bf16 with channels on lanes (bf16 I/O halves HBM traffic).
    x = jnp.transpose(x_ncl, (0, 2, 1)).astype(jnp.bfloat16)
    x = jnp.zeros((B, lp, cp), jnp.bfloat16).at[:, :L, :c0].set(x)

    def full_spec(shape):
        nd = len(shape)
        return pl.BlockSpec(shape, lambda b, _nd=nd: (0,) * _nd)

    in_specs = [pl.BlockSpec((tb, lp, cp), lambda b: (b, 0, 0))]
    in_specs += [full_spec(a.shape) for a in flat_args]

    out = pl.pallas_call(
        kernel,
        out_shape=jax.ShapeDtypeStruct((B, lp, cp), jnp.bfloat16),
        grid=(B // tb,),
        in_specs=in_specs,
        out_specs=pl.BlockSpec((tb, lp, cp), lambda b: (b, 0, 0)),
        compiler_params=pltpu.CompilerParams(
            dimension_semantics=("parallel",),
            vmem_limit_bytes=_vmem_limit_bytes()),
    )(x, *flat_args)

    # Slice off padding, restore PyTorch (B, C, L) layout, return f32.
    return jnp.transpose(out[:, :L, :c_last].astype(jnp.float32), (0, 2, 1))


def tcn_reference(x_ncl, params):
    """Pure-JAX f32 reference of the eval-mode PyTorch forward pass."""
    h = x_ncl.astype(jnp.float32)                       # (B, C, L)
    L = h.shape[-1]
    for i, p in enumerate(params):
        d = 2 ** i
        ks = p["w1"].shape[0]

        def causal_conv(z, w, b, scale):
            z = z * scale[None, :, None]
            out = jnp.zeros((z.shape[0], w.shape[2], L), jnp.float32) \
                + b[None, :, None]
            for k in range(ks):
                off = (ks - 1 - k) * d
                shifted = jnp.pad(z, ((0, 0), (0, 0), (off, 0)))[:, :, :L]
                out = out + jnp.einsum('bcl,co->bol', shifted, w[k])
            return out

        y = jax.nn.relu(causal_conv(h, p["w1"], p["b1"], p["bn1_scale"]))
        y2 = jax.nn.relu(causal_conv(y, p["w2"], p["b2"], p["bn2_scale"]))
        if "wd" in p:
            res = jnp.einsum('bcl,co->bol', h, p["wd"]) + p["bd"][None, :, None]
        else:
            res = h
        h = jax.nn.relu(y2 + res)
    return h


if __name__ == "__main__":
    key = jax.random.PRNGKey(0)
    k_x, k_p = jax.random.split(key)

    B, num_inputs, L = 2, 8, 16
    num_channels = [16, 16]
    kernel_size = 2

    x = jax.random.normal(k_x, (B, num_inputs, L), jnp.float32)  # NCL like PyTorch
    params = init_tcn_params(k_p, num_inputs, num_channels, kernel_size)

    out = temporal_conv_net(x, params)
    out = jax.block_until_ready(out)
    assert out.shape == (B, num_channels[-1], L), out.shape
    assert bool(jnp.all(jnp.isfinite(out)))

    # Numerical check against the pure-JAX reference (loose tolerance: the
    # kernel uses bf16 I/O and bf16 MXU operands with f32 accumulation).
    ref = tcn_reference(x, params)
    max_err = float(jnp.max(jnp.abs(out - ref)))
    scale = float(jnp.max(jnp.abs(ref)))
    assert max_err <= 0.05 * scale + 0.1, (max_err, scale)

    print("KERNEL_OK")
</pallas_src>

<mosaic_0001>
module attributes {stable_mosaic.version = 11 : i64} {
  func.func @kernel(%arg0: i32, %arg1: memref<1x16x128xbf16, #tpu.memory_space<vmem>>, %arg2: memref<2x128x256xbf16, #tpu.memory_space<vmem>>, %arg3: memref<2x128x256xbf16, #tpu.memory_space<vmem>>, %arg4: memref<1x128x128xbf16, #tpu.memory_space<vmem>>, %arg5: memref<5x1x128xf32, #tpu.memory_space<vmem>>, %arg6: memref<1x16x128xbf16, #tpu.memory_space<vmem>>) attributes {dimension_semantics = [#tpu.dimension_semantics<parallel>], iteration_bounds = array<i64: 2>, scalar_prefetch = 0 : i64, scratch_operands = 0 : i64, tpu.core_type = #tpu.core_type<tc>, window_params = [{transform_indices = @transform_0, window_bounds = array<i64: 1, 16, 128>}, {pipeline_mode = #tpu.pipeline_mode<synchronous>, transform_indices = @transform_1, window_bounds = array<i64: 2, 128, 256>}, {pipeline_mode = #tpu.pipeline_mode<synchronous>, transform_indices = @transform_2, window_bounds = array<i64: 2, 128, 256>}, {pipeline_mode = #tpu.pipeline_mode<synchronous>, transform_indices = @transform_3, window_bounds = array<i64: 1, 128, 128>}, {pipeline_mode = #tpu.pipeline_mode<synchronous>, transform_indices = @transform_4, window_bounds = array<i64: 5, 1, 128>}, {transform_indices = @transform_5, window_bounds = array<i64: 1, 16, 128>}]} {
    %c0 = arith.constant 0 : index
    %c0_0 = arith.constant 0 : index
    %c0_1 = arith.constant 0 : index
    %0 = vector.load %arg1[%c0, %c0_0, %c0_1] : memref<1x16x128xbf16, #tpu.memory_space<vmem>>, vector<1x16x128xbf16>
    %1 = vector.shape_cast %0 : vector<1x16x128xbf16> to vector<16x128xbf16>
    %2 = arith.extf %1 : vector<16x128xbf16> to vector<16x128xf32>
    %3 = tpu.iota {dimensions = array<i32: 1>} : vector<1x16x128xi32>
    %4 = vector.shape_cast %3 : vector<1x16x128xi32> to vector<16x128xi32>
    %5 = arith.truncf %2 : vector<16x128xf32> to vector<16x128xbf16>
    %c0_2 = arith.constant 0 : index
    %c0_3 = arith.constant 0 : index
    %c0_4 = arith.constant 0 : index
    %6 = vector.load %arg2[%c0_2, %c0_3, %c0_4] : memref<2x128x256xbf16, #tpu.memory_space<vmem>>, vector<1x128x256xbf16>
    %7 = vector.shape_cast %6 : vector<1x128x256xbf16> to vector<128x256xbf16>
    %c0_5 = arith.constant 0 : index
    %c0_6 = arith.constant 0 : index
    %c0_7 = arith.constant 0 : index
    %8 = vector.load %arg5[%c0_5, %c0_6, %c0_7] : memref<5x1x128xf32, #tpu.memory_space<vmem>>, vector<1x1x128xf32>
    %9 = vector.shape_cast %8 : vector<1x1x128xf32> to vector<1x128xf32>
    %cst = arith.constant dense<0.000000e+00> : vector<16x256xf32>
    %10 = tpu.matmul %5, %7, %cst {dimension_numbers = #tpu.dot_dimension_numbers<[1], [0], [0], [1], [0, 0, 1, 1], [], []>} : vector<16x128xbf16>, vector<128x256xbf16>, vector<16x256xf32> -> vector<16x256xf32>
    %11 = vector.extract_strided_slice %10 {offsets = [0, 0], sizes = [16, 128], strides = [1, 1]} : vector<16x256xf32> to vector<16x128xf32>
    %12 = vector.extract_strided_slice %10 {offsets = [0, 128], sizes = [16, 128], strides = [1, 1]} : vector<16x256xf32> to vector<16x128xf32>
    %c1_i32 = arith.constant 1 : i32
    %13 = tpu.dynamic_rotate %12 by %c1_i32 dim 0 : vector<16x128xf32>, i32 -> vector<16x128xf32>
    %c1_i32_8 = arith.constant 1 : i32
    %14 = vector.broadcast %c1_i32_8 : i32 to vector<16x128xi32>
    %15 = arith.cmpi sge, %4, %14 : vector<16x128xi32>
    %cst_9 = arith.constant 0.000000e+00 : f32
    %16 = vector.broadcast %cst_9 : f32 to vector<16x128xf32>
    %17 = arith.select %15, %13, %16 : vector<16x128xi1>, vector<16x128xf32>
    %18 = arith.addf %11, %17 : vector<16x128xf32>
    %19 = vector.broadcast %9 : vector<1x128xf32> to vector<16x128xf32>
    %20 = arith.addf %18, %19 : vector<16x128xf32>
    %cst_10 = arith.constant 0.000000e+00 : f32
    %21 = vector.broadcast %cst_10 : f32 to vector<16x128xf32>
    %22 = arith.maximumf %20, %21 : vector<16x128xf32>
    %23 = arith.truncf %22 : vector<16x128xf32> to vector<16x128xbf16>
    %c0_11 = arith.constant 0 : index
    %c0_12 = arith.constant 0 : index
    %c0_13 = arith.constant 0 : index
    %24 = vector.load %arg3[%c0_11, %c0_12, %c0_13] : memref<2x128x256xbf16, #tpu.memory_space<vmem>>, vector<1x128x256xbf16>
    %25 = vector.shape_cast %24 : vector<1x128x256xbf16> to vector<128x256xbf16>
    %c1 = arith.constant 1 : index
    %c0_14 = arith.constant 0 : index
    %c0_15 = arith.constant 0 : index
    %26 = vector.load %arg5[%c1, %c0_14, %c0_15] : memref<5x1x128xf32, #tpu.memory_space<vmem>>, vector<1x1x128xf32>
    %27 = vector.shape_cast %26 : vector<1x1x128xf32> to vector<1x128xf32>
    %cst_16 = arith.constant dense<0.000000e+00> : vector<16x256xf32>
    %28 = tpu.matmul %23, %25, %cst_16 {dimension_numbers = #tpu.dot_dimension_numbers<[1], [0], [0], [1], [0, 0, 1, 1], [], []>} : vector<16x128xbf16>, vector<128x256xbf16>, vector<16x256xf32> -> vector<16x256xf32>
    %29 = vector.extract_strided_slice %28 {offsets = [0, 0], sizes = [16, 128], strides = [1, 1]} : vector<16x256xf32> to vector<16x128xf32>
    %30 = vector.extract_strided_slice %28 {offsets = [0, 128], sizes = [16, 128], strides = [1, 1]} : vector<16x256xf32> to vector<16x128xf32>
    %c1_i32_17 = arith.constant 1 : i32
    %31 = tpu.dynamic_rotate %30 by %c1_i32_17 dim 0 : vector<16x128xf32>, i32 -> vector<16x128xf32>
    %cst_18 = arith.constant 0.000000e+00 : f32
    %32 = vector.broadcast %cst_18 : f32 to vector<16x128xf32>
    %33 = arith.select %15, %31, %32 : vector<16x128xi1>, vector<16x128xf32>
    %34 = arith.addf %29, %33 : vector<16x128xf32>
    %35 = vector.broadcast %27 : vector<1x128xf32> to vector<16x128xf32>
    %36 = arith.addf %34, %35 : vector<16x128xf32>
    %cst_19 = arith.constant 0.000000e+00 : f32
    %37 = vector.broadcast %cst_19 : f32 to vector<16x128xf32>
    %38 = arith.maximumf %36, %37 : vector<16x128xf32>
    %c0_20 = arith.constant 0 : index
    %c0_21 = arith.constant 0 : index
    %c0_22 = arith.constant 0 : index
    %39 = vector.load %arg4[%c0_20, %c0_21, %c0_22] : memref<1x128x128xbf16, #tpu.memory_space<vmem>>, vector<1x128x128xbf16>
    %40 = vector.shape_cast %39 : vector<1x128x128xbf16> to vector<128x128xbf16>
    %cst_23 = arith.constant dense<0.000000e+00> : vector<16x128xf32>
    %41 = tpu.matmul %5, %40, %cst_23 {dimension_numbers = #tpu.dot_dimension_numbers<[1], [0], [0], [1], [0, 0, 1, 1], [], []>} : vector<16x128xbf16>, vector<128x128xbf16>, vector<16x128xf32> -> vector<16x128xf32>
    %c2 = arith.constant 2 : index
    %c0_24 = arith.constant 0 : index
    %c0_25 = arith.constant 0 : index
    %42 = vector.load %arg5[%c2, %c0_24, %c0_25] : memref<5x1x128xf32, #tpu.memory_space<vmem>>, vector<1x1x128xf32>
    %43 = vector.shape_cast %42 : vector<1x1x128xf32> to vector<1x128xf32>
    %44 = vector.broadcast %43 : vector<1x128xf32> to vector<16x128xf32>
    %45 = arith.addf %41, %44 : vector<16x128xf32>
    %46 = arith.addf %38, %45 : vector<16x128xf32>
    %cst_26 = arith.constant 0.000000e+00 : f32
    %47 = vector.broadcast %cst_26 : f32 to vector<16x128xf32>
    %48 = arith.maximumf %46, %47 : vector<16x128xf32>
    %49 = arith.truncf %48 : vector<16x128xf32> to vector<16x128xbf16>
    %c1_27 = arith.constant 1 : index
    %c0_28 = arith.constant 0 : index
    %c0_29 = arith.constant 0 : index
    %50 = vector.load %arg2[%c1_27, %c0_28, %c0_29] : memref<2x128x256xbf16, #tpu.memory_space<vmem>>, vector<1x128x256xbf16>
    %51 = vector.shape_cast %50 : vector<1x128x256xbf16> to vector<128x256xbf16>
    %c3 = arith.constant 3 : index
    %c0_30 = arith.constant 0 : index
    %c0_31 = arith.constant 0 : index
    %52 = vector.load %arg5[%c3, %c0_30, %c0_31] : memref<5x1x128xf32, #tpu.memory_space<vmem>>, vector<1x1x128xf32>
    %53 = vector.shape_cast %52 : vector<1x1x128xf32> to vector<1x128xf32>
    %cst_32 = arith.constant dense<0.000000e+00> : vector<16x256xf32>
    %54 = tpu.matmul %49, %51, %cst_32 {dimension_numbers = #tpu.dot_dimension_numbers<[1], [0], [0], [1], [0, 0, 1, 1], [], []>} : vector<16x128xbf16>, vector<128x256xbf16>, vector<16x256xf32> -> vector<16x256xf32>
    %55 = vector.extract_strided_slice %54 {offsets = [0, 0], sizes = [16, 128], strides = [1, 1]} : vector<16x256xf32> to vector<16x128xf32>
    %56 = vector.extract_strided_slice %54 {offsets = [0, 128], sizes = [16, 128], strides = [1, 1]} : vector<16x256xf32> to vector<16x128xf32>
    %c2_i32 = arith.constant 2 : i32
    %57 = tpu.dynamic_rotate %56 by %c2_i32 dim 0 : vector<16x128xf32>, i32 -> vector<16x128xf32>
    %c2_i32_33 = arith.constant 2 : i32
    %58 = vector.broadcast %c2_i32_33 : i32 to vector<16x128xi32>
    %59 = arith.cmpi sge, %4, %58 : vector<16x128xi32>
    %cst_34 = arith.constant 0.000000e+00 : f32
    %60 = vector.broadcast %cst_34 : f32 to vector<16x128xf32>
    %61 = arith.select %59, %57, %60 : vector<16x128xi1>, vector<16x128xf32>
    %62 = arith.addf %55, %61 : vector<16x128xf32>
    %63 = vector.broadcast %53 : vector<1x128xf32> to vector<16x128xf32>
    %64 = arith.addf %62, %63 : vector<16x128xf32>
    %cst_35 = arith.constant 0.000000e+00 : f32
    %65 = vector.broadcast %cst_35 : f32 to vector<16x128xf32>
    %66 = arith.maximumf %64, %65 : vector<16x128xf32>
    %67 = arith.truncf %66 : vector<16x128xf32> to vector<16x128xbf16>
    %c1_36 = arith.constant 1 : index
    %c0_37 = arith.constant 0 : index
    %c0_38 = arith.constant 0 : index
    %68 = vector.load %arg3[%c1_36, %c0_37, %c0_38] : memref<2x128x256xbf16, #tpu.memory_space<vmem>>, vector<1x128x256xbf16>
    %69 = vector.shape_cast %68 : vector<1x128x256xbf16> to vector<128x256xbf16>
    %c4 = arith.constant 4 : index
    %c0_39 = arith.constant 0 : index
    %c0_40 = arith.constant 0 : index
    %70 = vector.load %arg5[%c4, %c0_39, %c0_40] : memref<5x1x128xf32, #tpu.memory_space<vmem>>, vector<1x1x128xf32>
    %71 = vector.shape_cast %70 : vector<1x1x128xf32> to vector<1x128xf32>
    %cst_41 = arith.constant dense<0.000000e+00> : vector<16x256xf32>
    %72 = tpu.matmul %67, %69, %cst_41 {dimension_numbers = #tpu.dot_dimension_numbers<[1], [0], [0], [1], [0, 0, 1, 1], [], []>} : vector<16x128xbf16>, vector<128x256xbf16>, vector<16x256xf32> -> vector<16x256xf32>
    %73 = vector.extract_strided_slice %72 {offsets = [0, 0], sizes = [16, 128], strides = [1, 1]} : vector<16x256xf32> to vector<16x128xf32>
    %74 = vector.extract_strided_slice %72 {offsets = [0, 128], sizes = [16, 128], strides = [1, 1]} : vector<16x256xf32> to vector<16x128xf32>
    %c2_i32_42 = arith.constant 2 : i32
    %75 = tpu.dynamic_rotate %74 by %c2_i32_42 dim 0 : vector<16x128xf32>, i32 -> vector<16x128xf32>
    %cst_43 = arith.constant 0.000000e+00 : f32
    %76 = vector.broadcast %cst_43 : f32 to vector<16x128xf32>
    %77 = arith.select %59, %75, %76 : vector<16x128xi1>, vector<16x128xf32>
    %78 = arith.addf %73, %77 : vector<16x128xf32>
    %79 = vector.broadcast %71 : vector<1x128xf32> to vector<16x128xf32>
    %80 = arith.addf %78, %79 : vector<16x128xf32>
    %cst_44 = arith.constant 0.000000e+00 : f32
    %81 = vector.broadcast %cst_44 : f32 to vector<16x128xf32>
    %82 = arith.maximumf %80, %81 : vector<16x128xf32>
    %83 = arith.addf %82, %48 : vector<16x128xf32>
    %cst_45 = arith.constant 0.000000e+00 : f32
    %84 = vector.broadcast %cst_45 : f32 to vector<16x128xf32>
    %85 = arith.maximumf %83, %84 : vector<16x128xf32>
    %86 = arith.truncf %85 : vector<16x128xf32> to vector<16x128xbf16>
    %87 = vector.shape_cast %86 : vector<16x128xbf16> to vector<1x16x128xbf16>
    %c0_46 = arith.constant 0 : index
    %c0_47 = arith.constant 0 : index
    %c0_48 = arith.constant 0 : index
    %88 = vector.load %arg6[%c0_46, %c0_47, %c0_48] : memref<1x16x128xbf16, #tpu.memory_space<vmem>>, vector<1x16x128xbf16>
    tpu.vector_store %arg6[%c0_46, %c0_47, %c0_48], %87 {strides = array<i32>} : memref<1x16x128xbf16, #tpu.memory_space<vmem>>, vector<1x16x128xbf16>,
    return
  }
  func.func @transform_0(%arg0: i32) -> (i32, i32, i32) {
    %c0_i32 = arith.constant 0 : i32
    %c0_i32_0 = arith.constant 0 : i32
    %c0_i32_1 = arith.constant 0 : i32
    return %arg0, %c0_i32, %c0_i32_0 : i32, i32, i32
  }
  func.func @transform_1(%arg0: i32) -> (i32, i32, i32) {
    %c0_i32 = arith.constant 0 : i32
    %c0_i32_0 = arith.constant 0 : i32
    %c0_i32_1 = arith.constant 0 : i32
    %c0_i32_2 = arith.constant 0 : i32
    return %c0_i32, %c0_i32_0, %c0_i32_1 : i32, i32, i32
  }
  func.func @transform_2(%arg0: i32) -> (i32, i32, i32) {
    %c0_i32 = arith.constant 0 : i32
    %c0_i32_0 = arith.constant 0 : i32
    %c0_i32_1 = arith.constant 0 : i32
    %c0_i32_2 = arith.constant 0 : i32
    return %c0_i32, %c0_i32_0, %c0_i32_1 : i32, i32, i32
  }
  func.func @transform_3(%arg0: i32) -> (i32, i32, i32) {
    %c0_i32 = arith.constant 0 : i32
    %c0_i32_0 = arith.constant 0 : i32
    %c0_i32_1 = arith.constant 0 : i32
    %c0_i32_2 = arith.constant 0 : i32
    return %c0_i32, %c0_i32_0, %c0_i32_1 : i32, i32, i32
  }
  func.func @transform_4(%arg0: i32) -> (i32, i32, i32) {
    %c0_i32 = arith.constant 0 : i32
    %c0_i32_0 = arith.constant 0 : i32
    %c0_i32_1 = arith.constant 0 : i32
    %c0_i32_2 = arith.constant 0 : i32
    return %c0_i32, %c0_i32_0, %c0_i32_1 : i32, i32, i32
  }
  func.func @transform_5(%arg0: i32) -> (i32, i32, i32) {
    %c0_i32 = arith.constant 0 : i32
    %c0_i32_0 = arith.constant 0 : i32
    %c0_i32_1 = arith.constant 0 : i32
    return %arg0, %c0_i32, %c0_i32_0 : i32, i32, i32
  }
}

</mosaic_0001>

<llo_original>
// kernel: tpu_custom_call.1
$region0: #{tpu_custom_call.1}
  #allocation0 [shape = 'u32[]', space=smem, size = 0x4, offset = 0x4, fixed_abs, tag = 'smem constant byte address 0x4 - core index']
  #allocation1 [shape = 'u32[144,128]{1,0:T(1,128)}', space=vmem, size = 0x12000, scoped, tag = 'internal scratch']
  %s0 = inlined_call_operand.hbm [shape: bf16[2,16,128], index: 0, kind: input, shape index: {}]
  %s1 = inlined_call_operand.hbm [shape: bf16[2,128,256], index: 1, kind: input, shape index: {}]
  %s2 = inlined_call_operand.hbm [shape: bf16[2,128,256], index: 2, kind: input, shape index: {}]
  %s3 = inlined_call_operand.hbm [shape: bf16[1,128,128], index: 3, kind: input, shape index: {}]
  %s4 = inlined_call_operand.vmem [shape: f32[5,1,128], index: 4, kind: input, shape index: {}]
  %s5 = inlined_call_operand.hbm [shape: bf16[2,16,128], index: 5, kind: output, shape index: {}]
  %s6 = sld [smem:[#allocation0]]
  $region69: #{tpu_custom_call.1} parent=0
    _
  %s8 = ssub.s32 1, %s6
  %s9 = scalar_select 0, %s8, %s6
  $region1: #{tpu_custom_call.1} parent=0
    #allocation2 [shape = 'u8[8192]{0}', space=vmem, size = 0x2000, scoped, tag = 'input window, operand 0']
    #allocation3 [shape = 's32[2]{0}', space=sflag, size = 0x8, scoped, tag = 'scoped memory for tpu_custom_call.1']
    #allocation4 [shape = 's32[2]{0}', space=sflag, size = 0x8, scoped, tag = 'scoped memory for tpu_custom_call.1']
    #allocation5 [shape = 'u8[131072]{0}', space=vmem, size = 0x20000, scoped, tag = 'input window, operand 1, single buffered']
    #allocation6 [shape = 's32[1]{0}', space=sflag, size = 0x4, scoped, tag = 'scoped memory for tpu_custom_call.1']
    #allocation7 [shape = 'u8[131072]{0}', space=vmem, size = 0x20000, scoped, tag = 'input window, operand 2, single buffered']
    #allocation8 [shape = 'u8[32768]{0}', space=vmem, size = 0x8000, scoped, tag = 'input window, operand 3, single buffered']
    #allocation9 [shape = 's32[1]{0}', space=sflag, size = 0x4, scoped, tag = 'scoped memory for tpu_custom_call.1']
    #allocation10 [shape = 'u8[8192]{0}', space=vmem, size = 0x2000, scoped, tag = 'output window, operand 0']
    %10 = vsyncpa [#allocation3], 0
    %s11 = scalar_lea.sflag [#allocation3], 1
    %12 = vsyncpa %s11, 0
    %13 = vsyncpa [#allocation6], 0
    %14 = vsyncpa [#allocation9], 0
    %15 = vsyncpa [#allocation4], 0
    %s16 = scalar_lea.sflag [#allocation4], 1
    %17 = vsyncpa %s16, 0
    loop: start=0, step=1, limit=4
    $region2: #{tpu_custom_call.1} parent=1 // loop_pre_header
      _
    $region3: #{tpu_custom_call.1} parent=1 // loop_header
      %s19 = sphi 0, %s23
      %p20 = scmp.ge.s32.totalorder %s19, 4
      %s29 = sphi 0, %s31
      %s32 = sphi 0, %s29
      %s33 = sphi 0, %s32
      %s49 = sphi 0, %s33
      %s53 = sphi 0, %s53
      %s55 = sphi 0, %s53
      %s56 = sphi 0, %s55
      %s70 = sphi 0, %s56
      %s74 = sphi 0, %s74
      %s76 = sphi 0, %s74
      %s77 = sphi 0, %s76
      %s91 = sphi 0, %s77
      %s95 = sphi 0, %s95
      %s97 = sphi 0, %s95
      %s98 = sphi 0, %s97
      %s112 = sphi 0, %s98
      %s116 = sphi 0, %s116
      %s118 = sphi 0, %s116
      %s119 = sphi 0, %s118
      %s133 = sphi 0, %s119
      %s139 = sphi 0, %s141
      %s142 = sphi 0, %s139
      %s143 = sphi 0, %s142
      %s159 = sphi 0, %s143
    $region4: #{tpu_custom_call.1} parent=1 // loop_header_branch
      %22 = sbr.rel (%p20) target = $region8
    $region5: #{tpu_custom_call.1} parent=1 // loop_body
      %s24 = ssub.s32 %s19, 1
      %s25 = ssub.s32 %s19, 2
      %s26 = sadd.s32 %s19, 1
      %s27 = ssub.s32 %s19, %s26
      %p28 = scmp.eq.s32.totalorder %s27, 0
      %s30 = sadd.s32 %s29, 1
      %s31 = scalar_select %p28, %s29, %s30
      %p34 = pneg %p28
      %p35 = scmp.eq.s32.totalorder %s19, 1
      %p36 = por %p34, %p35
      %p37 = scmp.ne.s32.totalorder %s29, %s32
      %p38 = scmp.eq.s32.totalorder %s19, 0
      %p39 = por %p37, %p38
      %p40 = scmp.ne.s32.totalorder %s29, %s32
      %p41 = scmp.eq.s32.totalorder %s24, 1
      %p42 = por %p40, %p41
      %p43 = scmp.ne.s32.totalorder %s32, %s33
      %p44 = scmp.eq.s32.totalorder %s24, 0
      %p45 = por %p43, %p44
      %p46 = scmp.ne.s32.totalorder %s32, %s33
      %p47 = scmp.eq.s32.totalorder %s25, 1
      %p48 = por %p46, %p47
      %p50 = scmp.ne.s32.totalorder %s33, %s49
      %p51 = scmp.eq.s32.totalorder %s25, 0
      %p52 = por %p50, %p51
      %s54 = sadd.s32 %s53, 1
      %p57 = scmp.eq.s32.totalorder %s19, 1
      %p58 = scmp.ne.s32.totalorder %s53, %s55
      %p59 = scmp.eq.s32.totalorder %s19, 0
      %p60 = por %p58, %p59
      %p61 = scmp.ne.s32.totalorder %s53, %s55
      %p62 = scmp.eq.s32.totalorder %s24, 1
      %p63 = por %p61, %p62
      %p64 = scmp.ne.s32.totalorder %s55, %s56
      %p65 = scmp.eq.s32.totalorder %s24, 0
      %p66 = por %p64, %p65
      %p67 = scmp.ne.s32.totalorder %s55, %s56
      %p68 = scmp.eq.s32.totalorder %s25, 1
      %p69 = por %p67, %p68
      %p71 = scmp.ne.s32.totalorder %s56, %s70
      %p72 = scmp.eq.s32.totalorder %s25, 0
      %p73 = por %p71, %p72
      %s75 = sadd.s32 %s74, 1
      %p78 = scmp.eq.s32.totalorder %s19, 1
      %p79 = scmp.ne.s32.totalorder %s74, %s76
      %p80 = scmp.eq.s32.totalorder %s19, 0
      %p81 = por %p79, %p80
      %p82 = scmp.ne.s32.totalorder %s74, %s76
      %p83 = scmp.eq.s32.totalorder %s24, 1
      %p84 = por %p82, %p83
      %p85 = scmp.ne.s32.totalorder %s76, %s77
      %p86 = scmp.eq.s32.totalorder %s24, 0
      %p87 = por %p85, %p86
      %p88 = scmp.ne.s32.totalorder %s76, %s77
      %p89 = scmp.eq.s32.totalorder %s25, 1
      %p90 = por %p88, %p89
      %p92 = scmp.ne.s32.totalorder %s77, %s91
      %p93 = scmp.eq.s32.totalorder %s25, 0
      %p94 = por %p92, %p93
      %s96 = sadd.s32 %s95, 1
      %p99 = scmp.eq.s32.totalorder %s19, 1
      %p100 = scmp.ne.s32.totalorder %s95, %s97
      %p101 = scmp.eq.s32.totalorder %s19, 0
      %p102 = por %p100, %p101
      %p103 = scmp.ne.s32.totalorder %s95, %s97
      %p104 = scmp.eq.s32.totalorder %s24, 1
      %p105 = por %p103, %p104
      %p106 = scmp.ne.s32.totalorder %s97, %s98
      %p107 = scmp.eq.s32.totalorder %s24, 0
      %p108 = por %p106, %p107
      %p109 = scmp.ne.s32.totalorder %s97, %s98
      %p110 = scmp.eq.s32.totalorder %s25, 1
      %p111 = por %p109, %p110
      %p113 = scmp.ne.s32.totalorder %s98, %s112
      %p114 = scmp.eq.s32.totalorder %s25, 0
      %p115 = por %p113, %p114
      %s117 = sadd.s32 %s116, 1
      %p120 = scmp.eq.s32.totalorder %s19, 1
      %p121 = scmp.ne.s32.totalorder %s116, %s118
      %p122 = scmp.eq.s32.totalorder %s19, 0
      %p123 = por %p121, %p122
      %p124 = scmp.ne.s32.totalorder %s116, %s118
      %p125 = scmp.eq.s32.totalorder %s24, 1
      %p126 = por %p124, %p125
      %p127 = scmp.ne.s32.totalorder %s118, %s119
      %p128 = scmp.eq.s32.totalorder %s24, 0
      %p129 = por %p127, %p128
      %p130 = scmp.ne.s32.totalorder %s118, %s119
      %p131 = scmp.eq.s32.totalorder %s25, 1
      %p132 = por %p130, %p131
      %p134 = scmp.ne.s32.totalorder %s119, %s133
      %p135 = scmp.eq.s32.totalorder %s25, 0
      %p136 = por %p134, %p135
      %s137 = ssub.s32 %s19, %s26
      %p138 = scmp.eq.s32.totalorder %s137, 0
      %s140 = sadd.s32 %s139, 1
      %s141 = scalar_select %p138, %s139, %s140
      %p144 = pneg %p138
      %p145 = scmp.eq.s32.totalorder %s19, 1
      %p146 = por %p144, %p145
      %p147 = scmp.ne.s32.totalorder %s139, %s142
      %p148 = scmp.eq.s32.totalorder %s19, 0
      %p149 = por %p147, %p148
      %p150 = scmp.ne.s32.totalorder %s139, %s142
      %p151 = scmp.eq.s32.totalorder %s24, 1
      %p152 = por %p150, %p151
      %p153 = scmp.ne.s32.totalorder %s142, %s143
      %p154 = scmp.eq.s32.totalorder %s24, 0
      %p155 = por %p153, %p154
      %p156 = scmp.ne.s32.totalorder %s142, %s143
      %p157 = scmp.eq.s32.totalorder %s25, 1
      %p158 = por %p156, %p157
      %p160 = scmp.ne.s32.totalorder %s143, %s159
      %p161 = scmp.eq.s32.totalorder %s25, 0
      %p162 = por %p160, %p161
      %p163 = scmp.le.s32.totalorder 1, %s19
      %p164 = scmp.lt.s32.totalorder %s19, 3
      %p165 = pnand %p163, %p164
      %p166 = pneg %p165
      // Predicated region
      $region9: #{tpu_custom_call.1} parent=5 // pred_check
        _
      $region10: #{tpu_custom_call.1} parent=5 // pred_check_branch
        %168 = sbr.rel (%p165) target = $region12
      $region11: #{tpu_custom_call.1} parent=5 // pred_region
        %s169 = ssub.s32 %s19, 1
        // Predicated region
        $region13: #{tpu_custom_call.1} parent=11 // pred_check
          %p170 = pneg %p66
        $region14: #{tpu_custom_call.1} parent=11 // pred_check_branch
          %172 = sbr.rel (%p170) target = $region16
        $region15: #{tpu_custom_call.1} parent=11 // pred_region
          %s174 = ssub.s32 4096, 4096
          %175 = vsyncadd [#allocation6], %s174
          %s176 = sshll.u32 [#allocation5], 4
          %s177 = int_to_ptr.vmem [resolvable:$true] %s176
          %182 = dma.hbm_to_vmem [thread:$0]  %s1, 4096, %s177, [#allocation6], 128, 128, 8
        $region16: #{tpu_custom_call.1} parent=11 // pred_fallthru
          _
        // Predicated region
        $region17: #{tpu_custom_call.1} parent=11 // pred_check
          %p183 = pneg %p87
        $region18: #{tpu_custom_call.1} parent=11 // pred_check_branch
          %185 = sbr.rel (%p183) target = $region20
        $region19: #{tpu_custom_call.1} parent=11 // pred_region
          %s187 = ssub.s32 4096, 4096
          %188 = vsyncadd [#allocation6], %s187
          %s189 = sshll.u32 [#allocation7], 4
          %s190 = int_to_ptr.vmem [resolvable:$true] %s189
          %195 = dma.hbm_to_vmem [thread:$0]  %s2, 4096, %s190, [#allocation6], 128, 128, 8
        $region20: #{tpu_custom_call.1} parent=11 // pred_fallthru
          _
        // Predicated region
        $region21: #{tpu_custom_call.1} parent=11 // pred_check
          %p196 = pneg %p108
        $region22: #{tpu_custom_call.1} parent=11 // pred_check_branch
          %198 = sbr.rel (%p196) target = $region24
        $region23: #{tpu_custom_call.1} parent=11 // pred_region
          %s200 = ssub.s32 1024, 1024
          %201 = vsyncadd [#allocation9], %s200
          %s202 = sshll.u32 [#allocation8], 4
          %s203 = int_to_ptr.vmem [resolvable:$true] %s202
          %208 = dma.hbm_to_vmem [thread:$0]  %s3, 1024, %s203, [#allocation9], 64, 64, 4
        $region24: #{tpu_custom_call.1} parent=11 // pred_fallthru
          _
        // Predicated region
        $region25: #{tpu_custom_call.1} parent=11 // pred_check
          %p209 = pneg %p129
        $region26: #{tpu_custom_call.1} parent=11 // pred_check_branch
          %211 = sbr.rel (%p209) target = $region28
        $region27: #{tpu_custom_call.1} parent=11 // pred_region
          _
        $region28: #{tpu_custom_call.1} parent=11 // pred_fallthru
          _
      $region12: #{tpu_custom_call.1} parent=5 // pred_fallthru
        _
      %p212 = scmp.lt.s32.totalorder %s19, 2
      // Predicated region
      $region29: #{tpu_custom_call.1} parent=5 // pred_check
        %p213 = pneg %p212
      $region30: #{tpu_custom_call.1} parent=5 // pred_check_branch
        %215 = sbr.rel (%p213) target = $region32
      $region31: #{tpu_custom_call.1} parent=5 // pred_region
        // Predicated region
        $region33: #{tpu_custom_call.1} parent=31 // pred_check
          %p216 = pneg %p39
        $region34: #{tpu_custom_call.1} parent=31 // pred_check_branch
          %218 = sbr.rel (%p216) target = $region36
        $region35: #{tpu_custom_call.1} parent=31 // pred_region
          %s219 = sand.u32 %s29, 1
          %s220 = scalar_lea.sflag [#allocation3], %s219
          %s221 = sand.u32 %s29, 1
          %s222 = smul.addr %s221, 8
          %s223 = scalar_lea.vmem [#allocation2], %s222
          %s225 = ssub.s32 128, 128
          %226 = vsyncadd %s220, %s225
          %s227 = smul.addr %s19, 2
          %s228 = smul.addr %s227, 64
          %s229 = scalar_lea.hbm %s0, %s228
          %s230 = sshll.u32 %s223, 4
          %s231 = int_to_ptr.vmem [resolvable:$true] %s230
          %236 = dma.hbm_to_vmem [thread:$0]  %s229, 128, %s231, %s220, 64, 64, 4
        $region36: #{tpu_custom_call.1} parent=31 // pred_fallthru
          _
      $region32: #{tpu_custom_call.1} parent=5 // pred_fallthru
        _
      %p237 = scmp.le.s32.totalorder 1, %s19
      %p238 = scmp.lt.s32.totalorder %s19, 3
      %p239 = pnand %p237, %p238
      %p240 = pneg %p239
      // Predicated region
      $region37: #{tpu_custom_call.1} parent=5 // pred_check
        _
      $region38: #{tpu_custom_call.1} parent=5 // pred_check_branch
        %242 = sbr.rel (%p239) target = $region40
      $region39: #{tpu_custom_call.1} parent=5 // pred_region
        %s243 = ssub.s32 %s19, 1
        %s244 = sand.u32 %s32, 1
        %s245 = scalar_lea.sflag [#allocation3], %s244
        %s246 = sand.u32 %s32, 1
        %s247 = smul.addr %s246, 8
        %s248 = scalar_lea.vmem [#allocation2], %s247
        // Predicated region
        $region41: #{tpu_custom_call.1} parent=39 // pred_check
          %p249 = pneg %p45
        $region42: #{tpu_custom_call.1} parent=39 // pred_check_branch
          %251 = sbr.rel (%p249) target = $region44
        $region43: #{tpu_custom_call.1} parent=39 // pred_region
          %252 = dma.done %s245, 128
        $region44: #{tpu_custom_call.1} parent=39 // pred_fallthru
          _
        // Predicated region
        $region45: #{tpu_custom_call.1} parent=39 // pred_check
          %p253 = pneg %p66
        $region46: #{tpu_custom_call.1} parent=39 // pred_check_branch
          %255 = sbr.rel (%p253) target = $region48
        $region47: #{tpu_custom_call.1} parent=39 // pred_region
          %256 = dma.done [#allocation6], 4096
        $region48: #{tpu_custom_call.1} parent=39 // pred_fallthru
          _
        // Predicated region
        $region49: #{tpu_custom_call.1} parent=39 // pred_check
          %p257 = pneg %p87
        $region50: #{tpu_custom_call.1} parent=39 // pred_check_branch
          %259 = sbr.rel (%p257) target = $region52
        $region51: #{tpu_custom_call.1} parent=39 // pred_region
          %260 = dma.done [#allocation6], 4096
        $region52: #{tpu_custom_call.1} parent=39 // pred_fallthru
          _
        // Predicated region
        $region53: #{tpu_custom_call.1} parent=39 // pred_check
          %p261 = pneg %p108
        $region54: #{tpu_custom_call.1} parent=39 // pred_check_branch
          %263 = sbr.rel (%p261) target = $region56
        $region55: #{tpu_custom_call.1} parent=39 // pred_region
          %264 = dma.done [#allocation9], 1024
        $region56: #{tpu_custom_call.1} parent=39 // pred_fallthru
          _
        %s265 = sand.u32 %s32, 1
        %s266 = scalar_lea.sflag [#allocation3], %s265
        %s267 = sand.u32 %s32, 1
        %s268 = smul.addr %s267, 8
        %s269 = scalar_lea.vmem [#allocation2], %s268
        %p270 = pneg %p45
        %p271 = pneg %p42
        %p272 = pneg %p66
        %p273 = pneg %p63
        %p274 = pneg %p87
        %p275 = pneg %p84
        %p276 = pneg %p108
        %p277 = pneg %p105
        %p278 = pneg %p129
        %p279 = pneg %p126
        %p280 = pneg %p155
        %p281 = pneg %p152
        %s282 = sand.u32 %s142, 1
        %s283 = scalar_lea.sflag [#allocation4], %s282
        %s284 = sand.u32 %s142, 1
        %s285 = smul.addr %s284, 8
        %s286 = scalar_lea.vmem [#allocation10], %s285
        %v288 = vld [vmem:[%s248] sm:$0xf]
        %v289 = vld [vmem:[%s248 + $0x4] sm:$0xf]
        %v290 = vlaneseq
        %v291 = vshrl.u32 %v290, 7
        %v292 = vadd.s32 %v291, 8
        %v293 = vld [vmem:[#allocation5] sm:$0xff]
        %v294 = vld [vmem:[#allocation5 + $0x8] sm:$0xff]
        %v295 = vld [vmem:[#allocation5 + $0x10] sm:$0xff]
        %v296 = vld [vmem:[#allocation5 + $0x18] sm:$0xff]
        %v297 = vld [vmem:[#allocation5 + $0x20] sm:$0xff]
        %v298 = vld [vmem:[#allocation5 + $0x28] sm:$0xff]
        %v299 = vld [vmem:[#allocation5 + $0x30] sm:$0xff]
        %v300 = vld [vmem:[#allocation5 + $0x38] sm:$0xff]
        %v301 = vld [vmem:[#allocation5 + $0x40] sm:$0xff]
        %v302 = vld [vmem:[#allocation5 + $0x48] sm:$0xff]
        %v303 = vld [vmem:[#allocation5 + $0x50] sm:$0xff]
        %v304 = vld [vmem:[#allocation5 + $0x58] sm:$0xff]
        %v305 = vld [vmem:[#allocation5 + $0x60] sm:$0xff]
        %v306 = vld [vmem:[#allocation5 + $0x68] sm:$0xff]
        %v307 = vld [vmem:[#allocation5 + $0x70] sm:$0xff]
        %v308 = vld [vmem:[#allocation5 + $0x78] sm:$0xff]
        %v309 = vld [vmem:[%s4] sm:$0x1]
        %v312 = vunpack.c.l.b16 %v288
        %v313 = vunpack.c.l.b16 %v289
        %v314 = vpack.c.b16 %v313, %v312
        %v332 = vunpack.c.l.b16 %v293
        %v333 = vunpack.c.h.b16 %v293
        %v334 = vunpack.c.l.b16 %v294
        %v335 = vunpack.c.h.b16 %v294
        %v336 = vunpack.c.l.b16 %v295
        %v337 = vunpack.c.h.b16 %v295
        %v338 = vunpack.c.l.b16 %v296
        %v339 = vunpack.c.h.b16 %v296
        %v340 = vunpack.c.l.b16 %v297
        %v341 = vunpack.c.h.b16 %v297
        %v342 = vunpack.c.l.b16 %v298
        %v343 = vunpack.c.h.b16 %v298
        %v344 = vunpack.c.l.b16 %v299
        %v345 = vunpack.c.h.b16 %v299
        %v346 = vunpack.c.l.b16 %v300
        %v347 = vunpack.c.h.b16 %v300
        %v348 = vunpack.c.l.b16 %v301
        %v349 = vunpack.c.h.b16 %v301
        %v350 = vunpack.c.l.b16 %v302
        %v351 = vunpack.c.h.b16 %v302
        %v352 = vunpack.c.l.b16 %v303
        %v353 = vunpack.c.h.b16 %v303
        %v354 = vunpack.c.l.b16 %v304
        %v355 = vunpack.c.h.b16 %v304
        %v356 = vunpack.c.l.b16 %v305
        %v357 = vunpack.c.h.b16 %v305
        %v358 = vunpack.c.l.b16 %v306
        %v359 = vunpack.c.h.b16 %v306
        %v360 = vunpack.c.l.b16 %v307
        %v361 = vunpack.c.h.b16 %v307
        %v362 = vunpack.c.l.b16 %v308
        %v363 = vunpack.c.h.b16 %v308
        %v364 = vpack.c.b16 %v334, %v332
        %v365 = vpack.c.b16 %v335, %v333
        %v366 = vpack.c.b16 %v338, %v336
        %v367 = vpack.c.b16 %v339, %v337
        %v368 = vpack.c.b16 %v342, %v340
        %v369 = vpack.c.b16 %v343, %v341
        %v370 = vpack.c.b16 %v346, %v344
        %v371 = vpack.c.b16 %v347, %v345
        %v372 = vpack.c.b16 %v350, %v348
        %v373 = vpack.c.b16 %v351, %v349
        %v374 = vpack.c.b16 %v354, %v352
        %v375 = vpack.c.b16 %v355, %v353
        %v376 = vpack.c.b16 %v358, %v356
        %v377 = vpack.c.b16 %v359, %v357
        %v378 = vpack.c.b16 %v362, %v360
        %v379 = vpack.c.b16 %v363, %v361
        %396 = vmatprep.subr.bf16.mxu0 %v365
        %397 = vmatpush1.bf16.msra.mxu0 %v364
        %398 = vmatprep.subr.bf16.mxu0 %v367
        %399 = vmatpush1.bf16.msra.mxu0 %v366
        %400 = vmatprep.subr.bf16.mxu0 %v369
        %401 = vmatpush1.bf16.msra.mxu0 %v368
        %402 = vmatprep.subr.bf16.mxu0 %v371
        %403 = vmatpush1.bf16.msra.mxu0 %v370
        %404 = vmatprep.subr.bf16.mxu0 %v373
        %405 = vmatpush1.bf16.msra.mxu0 %v372
        %406 = vmatprep.subr.bf16.mxu0 %v375
        %407 = vmatpush1.bf16.msra.mxu0 %v374
        %408 = vmatprep.subr.bf16.mxu0 %v377
        %409 = vmatpush1.bf16.msra.mxu0 %v376
        %410 = vmatprep.subr.bf16.mxu0 %v379
        %411 = vmatpush1.bf16.msra.mxu0 %v378
        %412 = vmatprep.subr.bf16.mxu0 0
        %413 = vmatpush1.bf16.msra.mxu0 0
        %414 = vmatprep.subr.bf16.mxu0 0
        %415 = vmatpush1.bf16.msra.mxu0 0
        %416 = vmatprep.subr.bf16.mxu0 0
        %417 = vmatpush1.bf16.msra.mxu0 0
        %418 = vmatprep.subr.bf16.mxu0 0
        %419 = vmatpush1.bf16.msra.mxu0 0
        %420 = vmatprep.subr.bf16.mxu0 0
        %421 = vmatpush1.bf16.msra.mxu0 0
        %422 = vmatprep.subr.bf16.mxu0 0
        %423 = vmatpush1.bf16.msra.mxu0 0
        %424 = vmatprep.subr.bf16.mxu0 0
        %425 = vmatpush1.bf16.msra.mxu0 0
        %426 = vmatprep.subr.bf16.mxu0 0
        %427 = vmatpush1.bf16.msra.mxu0 0
        %428 = vmatprep.mubr.bf16.mxu0 0
        %429 = vmatmul.mubr.bf16.gmra.mrb[0].mxu0 %v314
        %v430 = vpop.f32.mrb[0].mxu0
        %v431 = vadd.f32 0.0, %v430
        %v432 = vpop.f32.mrb[0].mxu0
        %v433 = vadd.f32 0.0, %v432
        %v434 = vpop.f32.mrb[0].mxu0
        %v435 = vadd.f32 0.0, %v434
        %v436 = vpop.f32.mrb[0].mxu0
        %v437 = vadd.f32 0.0, %v436
        %438 = vdwg.mxu0
        %v439 = vrot.slane %v433, 7
        %v440 = vrot.slane %v437, 7
        %vm441 = vcmp.lt.s32.totalorder %v291, 1
        %v442 = vsel %vm441, %v439, %v440
        %v443 = vsel %vm441, %v440, %v439
        %vm444 = vcmp.ge.s32.totalorder %v291, 1
        %vm445 = vcmp.ge.s32.totalorder %v292, 1
        %v446 = vsel %vm444, %v443, 0.0
        %v447 = vsel %vm445, %v442, 0.0
        %v448 = vadd.f32 %v431, %v446
        %v449 = vadd.f32 %v435, %v447
        %v451 = vlaneseq
        %v452 = vshrl.u32 %v451, 7
        %v453 = vsub.s32 0, %v452
        %v454 = vrot.slane %v309, %v453
        %v456 = vadd.f32 %v448, %v454
        %v457 = vadd.f32 %v449, %v454
        %v458 = vmax.f32 %v456, 0.0
        %v459 = vmax.f32 %v457, 0.0
        %v460 = vpack.c.bf16 %v459, %v458
        %v461 = vld [vmem:[#allocation7] sm:$0xff]
        %v462 = vld [vmem:[#allocation7 + $0x8] sm:$0xff]
        %v463 = vld [vmem:[#allocation7 + $0x10] sm:$0xff]
        %v464 = vld [vmem:[#allocation7 + $0x18] sm:$0xff]
        %v465 = vld [vmem:[#allocation7 + $0x20] sm:$0xff]
        %v466 = vld [vmem:[#allocation7 + $0x28] sm:$0xff]
        %v467 = vld [vmem:[#allocation7 + $0x30] sm:$0xff]
        %v468 = vld [vmem:[#allocation7 + $0x38] sm:$0xff]
        %v469 = vld [vmem:[#allocation7 + $0x40] sm:$0xff]
        %v470 = vld [vmem:[#allocation7 + $0x48] sm:$0xff]
        %v471 = vld [vmem:[#allocation7 + $0x50] sm:$0xff]
        %v472 = vld [vmem:[#allocation7 + $0x58] sm:$0xff]
        %v473 = vld [vmem:[#allocation7 + $0x60] sm:$0xff]
        %v474 = vld [vmem:[#allocation7 + $0x68] sm:$0xff]
        %v475 = vld [vmem:[#allocation7 + $0x70] sm:$0xff]
        %v476 = vld [vmem:[#allocation7 + $0x78] sm:$0xff]
        %s477 = scalar_lea.vmem %s4, 1
        %v478 = vld [vmem:[%s477] sm:$0x1]
        %v495 = vunpack.c.l.b16 %v461
        %v496 = vunpack.c.h.b16 %v461
        %v497 = vunpack.c.l.b16 %v462
        %v498 = vunpack.c.h.b16 %v462
        %v499 = vunpack.c.l.b16 %v463
        %v500 = vunpack.c.h.b16 %v463
        %v501 = vunpack.c.l.b16 %v464
        %v502 = vunpack.c.h.b16 %v464
        %v503 = vunpack.c.l.b16 %v465
        %v504 = vunpack.c.h.b16 %v465
        %v505 = vunpack.c.l.b16 %v466
        %v506 = vunpack.c.h.b16 %v466
        %v507 = vunpack.c.l.b16 %v467
        %v508 = vunpack.c.h.b16 %v467
        %v509 = vunpack.c.l.b16 %v468
        %v510 = vunpack.c.h.b16 %v468
        %v511 = vunpack.c.l.b16 %v469
        %v512 = vunpack.c.h.b16 %v469
        %v513 = vunpack.c.l.b16 %v470
        %v514 = vunpack.c.h.b16 %v470
        %v515 = vunpack.c.l.b16 %v471
        %v516 = vunpack.c.h.b16 %v471
        %v517 = vunpack.c.l.b16 %v472
        %v518 = vunpack.c.h.b16 %v472
        %v519 = vunpack.c.l.b16 %v473
        %v520 = vunpack.c.h.b16 %v473
        %v521 = vunpack.c.l.b16 %v474
        %v522 = vunpack.c.h.b16 %v474
        %v523 = vunpack.c.l.b16 %v475
        %v524 = vunpack.c.h.b16 %v475
        %v525 = vunpack.c.l.b16 %v476
        %v526 = vunpack.c.h.b16 %v476
        %v527 = vpack.c.b16 %v497, %v495
        %v528 = vpack.c.b16 %v498, %v496
        %v529 = vpack.c.b16 %v501, %v499
        %v530 = vpack.c.b16 %v502, %v500
        %v531 = vpack.c.b16 %v505, %v503
        %v532 = vpack.c.b16 %v506, %v504
        %v533 = vpack.c.b16 %v509, %v507
        %v534 = vpack.c.b16 %v510, %v508
        %v535 = vpack.c.b16 %v513, %v511
        %v536 = vpack.c.b16 %v514, %v512
        %v537 = vpack.c.b16 %v517, %v515
        %v538 = vpack.c.b16 %v518, %v516
        %v539 = vpack.c.b16 %v521, %v519
        %v540 = vpack.c.b16 %v522, %v520
        %v541 = vpack.c.b16 %v525, %v523
        %v542 = vpack.c.b16 %v526, %v524
        %559 = vmatprep.subr.bf16.mxu0 %v528
        %560 = vmatpush1.bf16.msra.mxu0 %v527
        %561 = vmatprep.subr.bf16.mxu0 %v530
        %562 = vmatpush1.bf16.msra.mxu0 %v529
        %563 = vmatprep.subr.bf16.mxu0 %v532
        %564 = vmatpush1.bf16.msra.mxu0 %v531
        %565 = vmatprep.subr.bf16.mxu0 %v534
        %566 = vmatpush1.bf16.msra.mxu0 %v533
        %567 = vmatprep.subr.bf16.mxu0 %v536
        %568 = vmatpush1.bf16.msra.mxu0 %v535
        %569 = vmatprep.subr.bf16.mxu0 %v538
        %570 = vmatpush1.bf16.msra.mxu0 %v537
        %571 = vmatprep.subr.bf16.mxu0 %v540
        %572 = vmatpush1.bf16.msra.mxu0 %v539
        %573 = vmatprep.subr.bf16.mxu0 %v542
        %574 = vmatpush1.bf16.msra.mxu0 %v541
        %575 = vmatprep.subr.bf16.mxu0 0
        %576 = vmatpush1.bf16.msra.mxu0 0
        %577 = vmatprep.subr.bf16.mxu0 0
        %578 = vmatpush1.bf16.msra.mxu0 0
        %579 = vmatprep.subr.bf16.mxu0 0
        %580 = vmatpush1.bf16.msra.mxu0 0
        %581 = vmatprep.subr.bf16.mxu0 0
        %582 = vmatpush1.bf16.msra.mxu0 0
        %583 = vmatprep.subr.bf16.mxu0 0
        %584 = vmatpush1.bf16.msra.mxu0 0
        %585 = vmatprep.subr.bf16.mxu0 0
        %586 = vmatpush1.bf16.msra.mxu0 0
        %587 = vmatprep.subr.bf16.mxu0 0
        %588 = vmatpush1.bf16.msra.mxu0 0
        %589 = vmatprep.subr.bf16.mxu0 0
        %590 = vmatpush1.bf16.msra.mxu0 0
        %591 = vmatprep.mubr.bf16.mxu0 0
        %592 = vmatmul.mubr.bf16.gmra.mrb[0].mxu0 %v460
        %v593 = vpop.f32.mrb[0].mxu0
        %v594 = vadd.f32 0.0, %v593
        %v595 = vpop.f32.mrb[0].mxu0
        %v596 = vadd.f32 0.0, %v595
        %v597 = vpop.f32.mrb[0].mxu0
        %v598 = vadd.f32 0.0, %v597
        %v599 = vpop.f32.mrb[0].mxu0
        %v600 = vadd.f32 0.0, %v599
        %601 = vdwg.mxu0
        %v602 = vrot.slane %v596, 7
        %v603 = vrot.slane %v600, 7
        %v604 = vsel %vm441, %v602, %v603
        %v605 = vsel %vm441, %v603, %v602
        %v606 = vsel %vm444, %v605, 0.0
        %v607 = vsel %vm445, %v604, 0.0
        %v608 = vadd.f32 %v594, %v606
        %v609 = vadd.f32 %v598, %v607
        %v611 = vlaneseq
        %v612 = vshrl.u32 %v611, 7
        %v613 = vsub.s32 0, %v612
        %v614 = vrot.slane %v478, %v613
        %v616 = vadd.f32 %v608, %v614
        %v617 = vadd.f32 %v609, %v614
        %v618 = vmax.f32 %v616, 0.0
        %v619 = vmax.f32 %v617, 0.0
        %v620 = vld [vmem:[#allocation8] sm:$0xf]
        %v621 = vld [vmem:[#allocation8 + $0x4] sm:$0xf]
        %v622 = vld [vmem:[#allocation8 + $0x8] sm:$0xf]
        %v623 = vld [vmem:[#allocation8 + $0xc] sm:$0xf]
        %v624 = vld [vmem:[#allocation8 + $0x10] sm:$0xf]
        %v625 = vld [vmem:[#allocation8 + $0x14] sm:$0xf]
        %v626 = vld [vmem:[#allocation8 + $0x18] sm:$0xf]
        %v627 = vld [vmem:[#allocation8 + $0x1c] sm:$0xf]
        %v628 = vld [vmem:[#allocation8 + $0x20] sm:$0xf]
        %v629 = vld [vmem:[#allocation8 + $0x24] sm:$0xf]
        %v630 = vld [vmem:[#allocation8 + $0x28] sm:$0xf]
        %v631 = vld [vmem:[#allocation8 + $0x2c] sm:$0xf]
        %v632 = vld [vmem:[#allocation8 + $0x30] sm:$0xf]
        %v633 = vld [vmem:[#allocation8 + $0x34] sm:$0xf]
        %v634 = vld [vmem:[#allocation8 + $0x38] sm:$0xf]
        %v635 = vld [vmem:[#allocation8 + $0x3c] sm:$0xf]
        %s636 = scalar_lea.vmem %s4, 2
        %v637 = vld [vmem:[%s636] sm:$0x1]
        %v639 = vlaneseq
        %v640 = vshrl.u32 %v639, 7
        %v641 = vsub.s32 0, %v640
        %v642 = vrot.slane %v637, %v641
        %v660 = vunpack.c.l.b16 %v620
        %v661 = vunpack.c.l.b16 %v621
        %v662 = vunpack.c.l.b16 %v622
        %v663 = vunpack.c.l.b16 %v623
        %v664 = vunpack.c.l.b16 %v624
        %v665 = vunpack.c.l.b16 %v625
        %v666 = vunpack.c.l.b16 %v626
        %v667 = vunpack.c.l.b16 %v627
        %v668 = vunpack.c.l.b16 %v628
        %v669 = vunpack.c.l.b16 %v629
        %v670 = vunpack.c.l.b16 %v630
        %v671 = vunpack.c.l.b16 %v631
        %v672 = vunpack.c.l.b16 %v632
        %v673 = vunpack.c.l.b16 %v633
        %v674 = vunpack.c.l.b16 %v634
        %v675 = vunpack.c.l.b16 %v635
        %v676 = vpack.c.b16 %v661, %v660
        %v677 = vpack.c.b16 %v663, %v662
        %v678 = vpack.c.b16 %v665, %v664
        %v679 = vpack.c.b16 %v667, %v666
        %v680 = vpack.c.b16 %v669, %v668
        %v681 = vpack.c.b16 %v671, %v670
        %v682 = vpack.c.b16 %v673, %v672
        %v683 = vpack.c.b16 %v675, %v674
        %692 = vmatprep.subr.bf16.mxu0 0
        %693 = vmatpush1.bf16.msra.mxu0 %v676
        %694 = vmatprep.subr.bf16.mxu0 0
        %695 = vmatpush1.bf16.msra.mxu0 %v677
        %696 = vmatprep.subr.bf16.mxu0 0
        %697 = vmatpush1.bf16.msra.mxu0 %v678
        %698 = vmatprep.subr.bf16.mxu0 0
        %699 = vmatpush1.bf16.msra.mxu0 %v679
        %700 = vmatprep.subr.bf16.mxu0 0
        %701 = vmatpush1.bf16.msra.mxu0 %v680
        %702 = vmatprep.subr.bf16.mxu0 0
        %703 = vmatpush1.bf16.msra.mxu0 %v681
        %704 = vmatprep.subr.bf16.mxu0 0
        %705 = vmatpush1.bf16.msra.mxu0 %v682
        %706 = vmatprep.subr.bf16.mxu0 0
        %707 = vmatpush1.bf16.msra.mxu0 %v683
        %708 = vmatprep.subr.bf16.mxu0 0
        %709 = vmatpush1.bf16.msra.mxu0 0
        %710 = vmatprep.subr.bf16.mxu0 0
        %711 = vmatpush1.bf16.msra.mxu0 0
        %712 = vmatprep.subr.bf16.mxu0 0
        %713 = vmatpush1.bf16.msra.mxu0 0
        %714 = vmatprep.subr.bf16.mxu0 0
        %715 = vmatpush1.bf16.msra.mxu0 0
        %716 = vmatprep.subr.bf16.mxu0 0
        %717 = vmatpush1.bf16.msra.mxu0 0
        %718 = vmatprep.subr.bf16.mxu0 0
        %719 = vmatpush1.bf16.msra.mxu0 0
        %720 = vmatprep.subr.bf16.mxu0 0
        %721 = vmatpush1.bf16.msra.mxu0 0
        %722 = vmatprep.subr.bf16.mxu0 0
        %723 = vmatpush1.bf16.msra.mxu0 0
        %724 = vmatprep.mubr.bf16.mxu0 0
        %725 = vmatmul.mubr.bf16.gmra.mrb[0].mxu0 %v314
        %v726 = vpop.f32.mrb[0].mxu0
        %v727 = vadd.f32 %v642, %v726
        %v728 = vpop.f32.mrb[0].mxu0
        %v729 = vpop.f32.mrb[0].mxu0
        %v730 = vadd.f32 %v642, %v729
        %v731 = vpop.f32.mrb[0].mxu0
        %732 = vdwg.mxu0
        %v733 = vadd.f32 %v618, %v727
        %v734 = vadd.f32 %v619, %v730
        %v735 = vmax.f32 %v733, 0.0
        %v736 = vmax.f32 %v734, 0.0
        %v737 = vpack.c.bf16 %v736, %v735
        %s738 = scalar_lea.vmem [#allocation5], 128
        %v739 = vld [vmem:[%s738] sm:$0xff]
        %v740 = vld [vmem:[%s738 + $0x8] sm:$0xff]
        %v741 = vld [vmem:[%s738 + $0x10] sm:$0xff]
        %v742 = vld [vmem:[%s738 + $0x18] sm:$0xff]
        %v743 = vld [vmem:[%s738 + $0x20] sm:$0xff]
        %v744 = vld [vmem:[%s738 + $0x28] sm:$0xff]
        %v745 = vld [vmem:[%s738 + $0x30] sm:$0xff]
        %v746 = vld [vmem:[%s738 + $0x38] sm:$0xff]
        %v747 = vld [vmem:[%s738 + $0x40] sm:$0xff]
        %v748 = vld [vmem:[%s738 + $0x48] sm:$0xff]
        %v749 = vld [vmem:[%s738 + $0x50] sm:$0xff]
        %v750 = vld [vmem:[%s738 + $0x58] sm:$0xff]
        %v751 = vld [vmem:[%s738 + $0x60] sm:$0xff]
        %v752 = vld [vmem:[%s738 + $0x68] sm:$0xff]
        %v753 = vld [vmem:[%s738 + $0x70] sm:$0xff]
        %v754 = vld [vmem:[%s738 + $0x78] sm:$0xff]
        %s755 = scalar_lea.vmem %s4, 3
        %v756 = vld [vmem:[%s755] sm:$0x1]
        %v773 = vunpack.c.l.b16 %v739
        %v774 = vunpack.c.h.b16 %v739
        %v775 = vunpack.c.l.b16 %v740
        %v776 = vunpack.c.h.b16 %v740
        %v777 = vunpack.c.l.b16 %v741
        %v778 = vunpack.c.h.b16 %v741
        %v779 = vunpack.c.l.b16 %v742
        %v780 = vunpack.c.h.b16 %v742
        %v781 = vunpack.c.l.b16 %v743
        %v782 = vunpack.c.h.b16 %v743
        %v783 = vunpack.c.l.b16 %v744
        %v784 = vunpack.c.h.b16 %v744
        %v785 = vunpack.c.l.b16 %v745
        %v786 = vunpack.c.h.b16 %v745
        %v787 = vunpack.c.l.b16 %v746
        %v788 = vunpack.c.h.b16 %v746
        %v789 = vunpack.c.l.b16 %v747
        %v790 = vunpack.c.h.b16 %v747
        %v791 = vunpack.c.l.b16 %v748
        %v792 = vunpack.c.h.b16 %v748
        %v793 = vunpack.c.l.b16 %v749
        %v794 = vunpack.c.h.b16 %v749
        %v795 = vunpack.c.l.b16 %v750
        %v796 = vunpack.c.h.b16 %v750
        %v797 = vunpack.c.l.b16 %v751
        %v798 = vunpack.c.h.b16 %v751
        %v799 = vunpack.c.l.b16 %v752
        %v800 = vunpack.c.h.b16 %v752
        %v801 = vunpack.c.l.b16 %v753
        %v802 = vunpack.c.h.b16 %v753
        %v803 = vunpack.c.l.b16 %v754
        %v804 = vunpack.c.h.b16 %v754
        %v805 = vpack.c.b16 %v775, %v773
        %v806 = vpack.c.b16 %v776, %v774
        %v807 = vpack.c.b16 %v779, %v777
        %v808 = vpack.c.b16 %v780, %v778
        %v809 = vpack.c.b16 %v783, %v781
        %v810 = vpack.c.b16 %v784, %v782
        %v811 = vpack.c.b16 %v787, %v785
        %v812 = vpack.c.b16 %v788, %v786
        %v813 = vpack.c.b16 %v791, %v789
        %v814 = vpack.c.b16 %v792, %v790
        %v815 = vpack.c.b16 %v795, %v793
        %v816 = vpack.c.b16 %v796, %v794
        %v817 = vpack.c.b16 %v799, %v797
        %v818 = vpack.c.b16 %v800, %v798
        %v819 = vpack.c.b16 %v803, %v801
        %v820 = vpack.c.b16 %v804, %v802
        %837 = vmatprep.subr.bf16.mxu0 %v806
        %838 = vmatpush1.bf16.msra.mxu0 %v805
        %839 = vmatprep.subr.bf16.mxu0 %v808
        %840 = vmatpush1.bf16.msra.mxu0 %v807
        %841 = vmatprep.subr.bf16.mxu0 %v810
        %842 = vmatpush1.bf16.msra.mxu0 %v809
        %843 = vmatprep.subr.bf16.mxu0 %v812
        %844 = vmatpush1.bf16.msra.mxu0 %v811
        %845 = vmatprep.subr.bf16.mxu0 %v814
        %846 = vmatpush1.bf16.msra.mxu0 %v813
        %847 = vmatprep.subr.bf16.mxu0 %v816
        %848 = vmatpush1.bf16.msra.mxu0 %v815
        %849 = vmatprep.subr.bf16.mxu0 %v818
        %850 = vmatpush1.bf16.msra.mxu0 %v817
        %851 = vmatprep.subr.bf16.mxu0 %v820
        %852 = vmatpush1.bf16.msra.mxu0 %v819
        %853 = vmatprep.subr.bf16.mxu0 0
        %854 = vmatpush1.bf16.msra.mxu0 0
        %855 = vmatprep.subr.bf16.mxu0 0
        %856 = vmatpush1.bf16.msra.mxu0 0
        %857 = vmatprep.subr.bf16.mxu0 0
        %858 = vmatpush1.bf16.msra.mxu0 0
        %859 = vmatprep.subr.bf16.mxu0 0
        %860 = vmatpush1.bf16.msra.mxu0 0
        %861 = vmatprep.subr.bf16.mxu0 0
        %862 = vmatpush1.bf16.msra.mxu0 0
        %863 = vmatprep.subr.bf16.mxu0 0
        %864 = vmatpush1.bf16.msra.mxu0 0
        %865 = vmatprep.subr.bf16.mxu0 0
        %866 = vmatpush1.bf16.msra.mxu0 0
        %867 = vmatprep.subr.bf16.mxu0 0
        %868 = vmatpush1.bf16.msra.mxu0 0
        %869 = vmatprep.mubr.bf16.mxu0 0
        %870 = vmatmul.mubr.bf16.gmra.mrb[0].mxu0 %v737
        %v871 = vpop.f32.mrb[0].mxu0
        %v872 = vadd.f32 0.0, %v871
        %v873 = vpop.f32.mrb[0].mxu0
        %v874 = vadd.f32 0.0, %v873
        %v875 = vpop.f32.mrb[0].mxu0
        %v876 = vadd.f32 0.0, %v875
        %v877 = vpop.f32.mrb[0].mxu0
        %v878 = vadd.f32 0.0, %v877
        %879 = vdwg.mxu0
        %v880 = vrot.slane %v874, 6
        %v881 = vrot.slane %v878, 6
        %vm882 = vcmp.lt.s32.totalorder %v291, 2
        %v883 = vsel %vm882, %v880, %v881
        %v884 = vsel %vm882, %v881, %v880
        %vm885 = vcmp.ge.s32.totalorder %v291, 2
        %vm886 = vcmp.ge.s32.totalorder %v292, 2
        %v887 = vsel %vm885, %v884, 0.0
        %v888 = vsel %vm886, %v883, 0.0
        %v889 = vadd.f32 %v872, %v887
        %v890 = vadd.f32 %v876, %v888
        %v892 = vlaneseq
        %v893 = vshrl.u32 %v892, 7
        %v894 = vsub.s32 0, %v893
        %v895 = vrot.slane %v756, %v894
        %v897 = vadd.f32 %v889, %v895
        %v898 = vadd.f32 %v890, %v895
        %v899 = vmax.f32 %v897, 0.0
        %v900 = vmax.f32 %v898, 0.0
        %v901 = vpack.c.bf16 %v900, %v899
        %s902 = scalar_lea.vmem [#allocation7], 128
        %v903 = vld [vmem:[%s902] sm:$0xff]
        %v904 = vld [vmem:[%s902 + $0x8] sm:$0xff]
        %v905 = vld [vmem:[%s902 + $0x10] sm:$0xff]
        %v906 = vld [vmem:[%s902 + $0x18] sm:$0xff]
        %v907 = vld [vmem:[%s902 + $0x20] sm:$0xff]
        %v908 = vld [vmem:[%s902 + $0x28] sm:$0xff]
        %v909 = vld [vmem:[%s902 + $0x30] sm:$0xff]
        %v910 = vld [vmem:[%s902 + $0x38] sm:$0xff]
        %v911 = vld [vmem:[%s902 + $0x40] sm:$0xff]
        %v912 = vld [vmem:[%s902 + $0x48] sm:$0xff]
        %v913 = vld [vmem:[%s902 + $0x50] sm:$0xff]
        %v914 = vld [vmem:[%s902 + $0x58] sm:$0xff]
        %v915 = vld [vmem:[%s902 + $0x60] sm:$0xff]
        %v916 = vld [vmem:[%s902 + $0x68] sm:$0xff]
        %v917 = vld [vmem:[%s902 + $0x70] sm:$0xff]
        %v918 = vld [vmem:[%s902 + $0x78] sm:$0xff]
        %s919 = scalar_lea.vmem %s4, 4
        %v920 = vld [vmem:[%s919] sm:$0x1]
        %v937 = vunpack.c.l.b16 %v903
        %v938 = vunpack.c.h.b16 %v903
        %v939 = vunpack.c.l.b16 %v904
        %v940 = vunpack.c.h.b16 %v904
        %v941 = vunpack.c.l.b16 %v905
        %v942 = vunpack.c.h.b16 %v905
        %v943 = vunpack.c.l.b16 %v906
        %v944 = vunpack.c.h.b16 %v906
        %v945 = vunpack.c.l.b16 %v907
        %v946 = vunpack.c.h.b16 %v907
        %v947 = vunpack.c.l.b16 %v908
        %v948 = vunpack.c.h.b16 %v908
        %v949 = vunpack.c.l.b16 %v909
        %v950 = vunpack.c.h.b16 %v909
        %v951 = vunpack.c.l.b16 %v910
        %v952 = vunpack.c.h.b16 %v910
        %v953 = vunpack.c.l.b16 %v911
        %v954 = vunpack.c.h.b16 %v911
        %v955 = vunpack.c.l.b16 %v912
        %v956 = vunpack.c.h.b16 %v912
        %v957 = vunpack.c.l.b16 %v913
        %v958 = vunpack.c.h.b16 %v913
        %v959 = vunpack.c.l.b16 %v914
        %v960 = vunpack.c.h.b16 %v914
        %v961 = vunpack.c.l.b16 %v915
        %v962 = vunpack.c.h.b16 %v915
        %v963 = vunpack.c.l.b16 %v916
        %v964 = vunpack.c.h.b16 %v916
        %v965 = vunpack.c.l.b16 %v917
        %v966 = vunpack.c.h.b16 %v917
        %v967 = vunpack.c.l.b16 %v918
        %v968 = vunpack.c.h.b16 %v918
        %v969 = vpack.c.b16 %v939, %v937
        %v970 = vpack.c.b16 %v940, %v938
        %v971 = vpack.c.b16 %v943, %v941
        %v972 = vpack.c.b16 %v944, %v942
        %v973 = vpack.c.b16 %v947, %v945
        %v974 = vpack.c.b16 %v948, %v946
        %v975 = vpack.c.b16 %v951, %v949
        %v976 = vpack.c.b16 %v952, %v950
        %v977 = vpack.c.b16 %v955, %v953
        %v978 = vpack.c.b16 %v956, %v954
        %v979 = vpack.c.b16 %v959, %v957
        %v980 = vpack.c.b16 %v960, %v958
        %v981 = vpack.c.b16 %v963, %v961
        %v982 = vpack.c.b16 %v964, %v962
        %v983 = vpack.c.b16 %v967, %v965
        %v984 = vpack.c.b16 %v968, %v966
        %1001 = vmatprep.subr.bf16.mxu0 %v970
        %1002 = vmatpush1.bf16.msra.mxu0 %v969
        %1003 = vmatprep.subr.bf16.mxu0 %v972
        %1004 = vmatpush1.bf16.msra.mxu0 %v971
        %1005 = vmatprep.subr.bf16.mxu0 %v974
        %1006 = vmatpush1.bf16.msra.mxu0 %v973
        %1007 = vmatprep.subr.bf16.mxu0 %v976
        %1008 = vmatpush1.bf16.msra.mxu0 %v975
        %1009 = vmatprep.subr.bf16.mxu0 %v978
        %1010 = vmatpush1.bf16.msra.mxu0 %v977
        %1011 = vmatprep.subr.bf16.mxu0 %v980
        %1012 = vmatpush1.bf16.msra.mxu0 %v979
        %1013 = vmatprep.subr.bf16.mxu0 %v982
        %1014 = vmatpush1.bf16.msra.mxu0 %v981
        %1015 = vmatprep.subr.bf16.mxu0 %v984
        %1016 = vmatpush1.bf16.msra.mxu0 %v983
        %1017 = vmatprep.subr.bf16.mxu0 0
        %1018 = vmatpush1.bf16.msra.mxu0 0
        %1019 = vmatprep.subr.bf16.mxu0 0
        %1020 = vmatpush1.bf16.msra.mxu0 0
        %1021 = vmatprep.subr.bf16.mxu0 0
        %1022 = vmatpush1.bf16.msra.mxu0 0
        %1023 = vmatprep.subr.bf16.mxu0 0
        %1024 = vmatpush1.bf16.msra.mxu0 0
        %1025 = vmatprep.subr.bf16.mxu0 0
        %1026 = vmatpush1.bf16.msra.mxu0 0
        %1027 = vmatprep.subr.bf16.mxu0 0
        %1028 = vmatpush1.bf16.msra.mxu0 0
        %1029 = vmatprep.subr.bf16.mxu0 0
        %1030 = vmatpush1.bf16.msra.mxu0 0
        %1031 = vmatprep.subr.bf16.mxu0 0
        %1032 = vmatpush1.bf16.msra.mxu0 0
        %1033 = vmatprep.mubr.bf16.mxu0 0
        %1034 = vmatmul.mubr.bf16.gmra.mrb[0].mxu0 %v901
        %v1035 = vpop.f32.mrb[0].mxu0
        %v1036 = vadd.f32 0.0, %v1035
        %v1037 = vpop.f32.mrb[0].mxu0
        %v1038 = vadd.f32 0.0, %v1037
        %v1039 = vpop.f32.mrb[0].mxu0
        %v1040 = vadd.f32 0.0, %v1039
        %v1041 = vpop.f32.mrb[0].mxu0
        %v1042 = vadd.f32 0.0, %v1041
        %1043 = vdwg.mxu0
        %v1044 = vrot.slane %v1038, 6
        %v1045 = vrot.slane %v1042, 6
        %v1046 = vsel %vm882, %v1044, %v1045
        %v1047 = vsel %vm882, %v1045, %v1044
        %v1048 = vsel %vm885, %v1047, 0.0
        %v1049 = vsel %vm886, %v1046, 0.0
        %v1050 = vadd.f32 %v1036, %v1048
        %v1051 = vadd.f32 %v1040, %v1049
        %v1053 = vlaneseq
        %v1054 = vshrl.u32 %v1053, 7
        %v1055 = vsub.s32 0, %v1054
        %v1056 = vrot.slane %v920, %v1055
        %v1058 = vadd.f32 %v1050, %v1056
        %v1059 = vadd.f32 %v1051, %v1056
        %v1060 = vmax.f32 %v1058, 0.0
        %v1061 = vmax.f32 %v1059, 0.0
        %v1062 = vadd.f32 %v1060, %v735
        %v1063 = vadd.f32 %v1061, %v736
        %v1064 = vmax.f32 %v1062, 0.0
        %v1065 = vmax.f32 %v1063, 0.0
        %v1066 = vpack.c.bf16 %v1065, %v1064
        %v1068 = vunpack.c.l.b16 %v1066
        %v1069 = vunpack.c.h.b16 %v1066
        %v1070 = vpack.c.b16 %v1068, %v1068
        %v1071 = vpack.c.b16 %v1069, %v1069
        %1074 = vst [vmem:[%s286] sm:$0xf] %v1070
        %1075 = vst [vmem:[%s286 + $0x4] sm:$0xf] %v1071
        %s1076 = sand.u32 %s142, 1
        %s1077 = scalar_lea.sflag [#allocation4], %s1076
        %s1078 = sand.u32 %s142, 1
        %s1079 = smul.addr %s1078, 8
        %s1080 = scalar_lea.vmem [#allocation10], %s1079
        // Predicated region
        $region57: #{tpu_custom_call.1} parent=39 // pred_check
          %p1081 = pneg %p152
        $region58: #{tpu_custom_call.1} parent=39 // pred_check_branch
          %1083 = sbr.rel (%p1081) target = $region60
        $region59: #{tpu_custom_call.1} parent=39 // pred_region
          %s1085 = ssub.s32 128, 128
          %1086 = vsyncadd %s1077, %s1085
          %s1087 = smul.addr %s24, 2
          %s1088 = smul.addr %s1087, 64
          %s1089 = scalar_lea.hbm %s5, %s1088
          %s1090 = sshll.u32 %s1080, 4
          %s1091 = int_to_ptr.vmem [resolvable:$true] %s1090
          %1096 = dma.vmem_to_hbm [thread:$0]  %s1091, 128, %s1089, %s1077, 64, 64, 4
        $region60: #{tpu_custom_call.1} parent=39 // pred_fallthru
          _
      $region40: #{tpu_custom_call.1} parent=5 // pred_fallthru
        _
      %p1097 = scmp.le.s32.totalorder 2, %s19
      // Predicated region
      $region61: #{tpu_custom_call.1} parent=5 // pred_check
        %p1098 = pneg %p1097
      $region62: #{tpu_custom_call.1} parent=5 // pred_check_branch
        %1100 = sbr.rel (%p1098) target = $region64
      $region63: #{tpu_custom_call.1} parent=5 // pred_region
        %s1101 = ssub.s32 %s19, 2
        // Predicated region
        $region65: #{tpu_custom_call.1} parent=63 // pred_check
          %p1102 = pneg %p158
        $region66: #{tpu_custom_call.1} parent=63 // pred_check_branch
          %1104 = sbr.rel (%p1102) target = $region68
        $region67: #{tpu_custom_call.1} parent=63 // pred_region
          %s1105 = sand.u32 %s143, 1
          %s1106 = scalar_lea.sflag [#allocation4], %s1105
          %s1107 = sand.u32 %s143, 1
          %s1108 = smul.addr %s1107, 8
          %s1109 = scalar_lea.vmem [#allocation10], %s1108
          %1110 = dma.done %s1106, 128
        $region68: #{tpu_custom_call.1} parent=63 // pred_fallthru
          _
      $region64: #{tpu_custom_call.1} parent=5 // pred_fallthru
        _
    $region6: #{tpu_custom_call.1} parent=1 // loop_footer
      %s23 = sadd.s32 1, %s19
    $region7: #{tpu_custom_call.1} parent=1 // loop_footer_branch
      %18 = sbr.rel target = $region3
    $region8: #{tpu_custom_call.1} parent=1 // loop_exit
      _
    %1111 = vsyncpa [#allocation3], 1
    %s1112 = scalar_lea.sflag [#allocation3], 1
    %1113 = vsyncpa %s1112, 1
    %1114 = vsyncpa [#allocation6], 1
    %1115 = vsyncpa [#allocation9], 1
    %1116 = vsyncpa [#allocation4], 1
    %s1117 = scalar_lea.sflag [#allocation4], 1
    %1118 = vsyncpa %s1117, 1

</llo_original>
